<compile_context>
chip_gen: v5e
topology: v5e:2x2
jax: 0.10.0
libtpu: 0.0.40
codegen_flags: <defaults>
</compile_context>

<pallas_src>
import jax
import jax.numpy as jnp
from jax.experimental import pallas as pl
from jax.experimental.pallas import tpu as pltpu


def _hbm_copy_kernel(adj_hbm_ref, out_hbm_ref, copy_sem):
    # Single direct HBM -> HBM DMA of the whole array.  No VMEM staging, no
    # vector loads/stores, no grid — the DMA engine moves the bytes and the
    # kernel just waits on the completion semaphore.
    cp = pltpu.make_async_copy(adj_hbm_ref, out_hbm_ref, copy_sem)
    cp.start()
    cp.wait()


def sp_adj_drop_edge(adj: jax.Array, keep_rate: float = 1.0,
                     *, materialize: bool = False) -> jax.Array:
    """Pallas/JAX implementation of SpAdjDropEdge.forward.

    WARNING: the reference module returns `adj` unconditionally (the sparse
    Bernoulli drop-edge branch sits after `return adj` and never executes), so
    `keep_rate` is accepted only for API parity and has NO runtime effect —
    no edges are ever dropped.

    materialize=False (default): zero-cost pass-through; the returned array is
        the *same* buffer object as the input (no fresh allocation), so do not
        rely on output aliasing/donation semantics of a fresh copy.
    materialize=True: produce a fresh HBM buffer via one direct HBM->HBM DMA
        (no VMEM round-trip, no tiling, works for any shape/dtype).
    """
    # TODO(synk): the sparse drop-edge branch in the reference is unreachable
    # dead code, so it is intentionally not implemented.
    del keep_rate

    if not materialize:
        # Fastest correct implementation: the op is a provable identity.
        return adj

    nbytes = int(adj.size) * jnp.dtype(adj.dtype).itemsize

    return pl.pallas_call(
        _hbm_copy_kernel,
        out_shape=jax.ShapeDtypeStruct(adj.shape, adj.dtype),
        in_specs=[pl.BlockSpec(memory_space=pl.ANY)],
        out_specs=pl.BlockSpec(memory_space=pl.ANY),
        scratch_shapes=[pltpu.SemaphoreType.DMA],
        cost_estimate=pl.CostEstimate(
            flops=0, transcendentals=0, bytes_accessed=2 * nbytes),
    )(adj)


if __name__ == "__main__":
    key = jax.random.PRNGKey(0)
    # Small dense adjacency matrix; dims deliberately NOT (8,128)-aligned to
    # show the DMA copy has no layout/tiling constraints.
    N, M = 200, 384
    adj = jax.random.uniform(key, (N, M), dtype=jnp.float32)

    # Hot path: identity, no kernel, no HBM traffic.
    out_fast = sp_adj_drop_edge(adj, keep_rate=0.8)
    assert out_fast is adj

    # Materialized path: single HBM->HBM DMA via Pallas.
    out_copy = jax.block_until_ready(
        sp_adj_drop_edge(adj, keep_rate=0.8, materialize=True))
    assert out_copy.shape == adj.shape and out_copy.dtype == adj.dtype
    assert bool(jnp.array_equal(out_copy, adj)), "identity pass-through mismatch"

    print("KERNEL_OK")
</pallas_src>

<mosaic_0001>
module attributes {stable_mosaic.version = 11 : i64} {
  func.func @_hbm_copy_kernel(%arg0: memref<200x384xf32, #tpu.memory_space<any>>, %arg1: memref<200x384xf32, #tpu.memory_space<any>>, %arg2: memref<!tpu.dma_semaphore, #tpu.memory_space<semaphore_mem>>) attributes {dimension_semantics = [], scalar_prefetch = 0 : i64, scratch_operands = 1 : i64, tpu.core_type = #tpu.core_type<tc>} {
    tpu.enqueue_dma source(%arg0 : memref<200x384xf32, #tpu.memory_space<any>>) target(%arg1 : memref<200x384xf32, #tpu.memory_space<any>>) target_semaphore(%arg2 : memref<!tpu.dma_semaphore, #tpu.memory_space<semaphore_mem>>)
    tpu.wait_dma2 semaphore(%arg2 : memref<!tpu.dma_semaphore, #tpu.memory_space<semaphore_mem>>) src(%arg0 : memref<200x384xf32, #tpu.memory_space<any>>) dst(%arg1 : memref<200x384xf32, #tpu.memory_space<any>>)
    return
  }
}

</mosaic_0001>

<llo_original>
// kernel: tpu_custom_call.1
$region0: #{tpu_custom_call.1}
  #allocation0 [shape = 'u32[]', space=smem, size = 0x4, offset = 0x4, fixed_abs, tag = 'smem constant byte address 0x4 - core index']
  #allocation1 [shape = 'u32[72,128]{1,0:T(1,128)}', space=vmem, size = 0x9000, scoped, tag = 'internal scratch']
  #allocation2 [shape = 's32[1]{0}', space=sflag, size = 0x4, scoped, tag = 'scratch operand']
  #allocation3 [shape = 's32[]', space=sflag, size = 0x4, offset = 0, fixed_abs, tag = 'sflag constant byte address 0x0 - dummy sync flag']
  #allocation4 [shape = 'u32[0]{0}', space=smem, size = 0, offset = 0, fixed_abs, tag = 'smem constant byte address 0x0 - null']
  %s0 = inlined_call_operand.hbm [shape: f32[200,384], index: 0, kind: input, shape index: {}]
  %s1 = inlined_call_operand.hbm [shape: f32[200,384], index: 1, kind: output, shape index: {}]
  %s2 = sld [smem:[#allocation0]]
  $region2: #{tpu_custom_call.1} parent=0
    _
  %s4 = ssub.s32 1, %s2
  %s5 = scalar_select 0, %s4, %s2
  %s7 = sshll.u32 1, 14
  %s8 = sxor.u32 4294967295, %s7
  %s10 = sshll.u32 %s0, 4
  %s11 = int_to_ptr.hbm [resolvable:$true] %s10
  %s12 = sshll.u32 %s1, 4
  %s13 = int_to_ptr.hbm [resolvable:$true] %s12
  %16 = dma.general %s11, 9600, %s13, [#allocation2], [#allocation3], [#allocation4], 0, 0
  %s17 = smul.u32 8, 25
  %s18 = smul.u32 %s17, 3
  %s19 = sshll.u32 %s18, 4
  %20 = dma.done [#allocation2], %s19
  %21 = vsyncmov [#allocation2]
  %s22 = vpop.sfrf %21
  %p23 = scmp.eq.s32.totalorder %s22, 0
  %p24 = pneg %p23
  %26 = shalt.err (%p24)

</llo_original>
